<compile_context>
chip_gen: v6e
topology: v6e:2x2x1
jax: 0.10.0
libtpu: 0.0.40
codegen_flags: <defaults>
</compile_context>

<pallas_src>
import jax
import jax.numpy as jnp
from jax.experimental import pallas as pl
from jax.experimental.pallas import tpu as pltpu

LEAKY_SLOPE = 0.01      # nn.LeakyReLU default negative_slope
BN_EPS = 1e-5           # nn.BatchNorm1d default eps
LANE = 128

# Synthetic stand-ins for EntityManager constants (7 Wonders Duel).
CARDS_COUNT = 73
WONDERS_COUNT = 12
POLICY_DIM = CARDS_COUNT * 2 + WONDERS_COUNT  # 158
VALUE_DIM = 2

GRIDLESS_MAX_BATCH = 2048        # single-shot (no grid) up to this many rows
MAX_BATCH_TILE = 2048            # grid path: max rows per step
VMEM_LIMIT_BYTES = 32 * 1024 * 1024


def _round_up(x, m):
    return (x + m - 1) // m * m


def _leaky_relu(x):
    return jnp.where(x > 0, x, LEAKY_SLOPE * x)


# --------------------------------------------------------------------------
# Kernel
# --------------------------------------------------------------------------
def _make_kernel(n_hidden, weight_dtype):
    """Kernel over one batch tile.  refs = (x, [w_i, b_i]*n_hidden, wh, bh, out)."""

    def kernel(*refs):
        x_ref = refs[0]
        out_ref = refs[-1]
        h = x_ref[...]                                    # f32 activations
        idx = 1
        for _ in range(n_hidden):
            w_ref, b_ref = refs[idx], refs[idx + 1]
            idx += 2
            z = jnp.dot(h.astype(weight_dtype), w_ref[...],
                        preferred_element_type=jnp.float32)
            z = z + b_ref[...]                            # f32 bias add
            h = _leaky_relu(z)                            # f32 elementwise
        wh_ref, bh_ref = refs[idx], refs[idx + 1]
        out = jnp.dot(h.astype(weight_dtype), wh_ref[...],
                      preferred_element_type=jnp.float32) + bh_ref[...]
        out_ref[...] = out.astype(out_ref.dtype)          # lane-dense bf16 store

    return kernel


# --------------------------------------------------------------------------
# Parameter construction / preparation
# --------------------------------------------------------------------------
def init_raw_params(key, game_features, hidden_features):
    """Raw f32 params mirroring the PyTorch module (weights stored as (in, out))."""
    hidden = []
    prev = game_features
    for out in hidden_features:
        key, kw, kb, kg, kbe, km, kv = jax.random.split(key, 7)
        bound = 1.0 / jnp.sqrt(prev)
        W = jax.random.uniform(kw, (prev, out), jnp.float32, -bound, bound)
        b = jax.random.uniform(kb, (out,), jnp.float32, -bound, bound)
        gamma = jax.random.uniform(kg, (out,), jnp.float32, 0.5, 1.5)
        beta = 0.1 * jax.random.normal(kbe, (out,), jnp.float32)
        mean = 0.1 * jax.random.normal(km, (out,), jnp.float32)
        var = jax.random.uniform(kv, (out,), jnp.float32, 0.5, 1.5)
        hidden.append((W, b, gamma, beta, mean, var))
        prev = out
    key, kwp, kbp, kwv, kbv = jax.random.split(key, 5)
    bound = 1.0 / jnp.sqrt(prev)
    Wp = jax.random.uniform(kwp, (prev, POLICY_DIM), jnp.float32, -bound, bound)
    bp = jax.random.uniform(kbp, (POLICY_DIM,), jnp.float32, -bound, bound)
    Wv = jax.random.uniform(kwv, (prev, VALUE_DIM), jnp.float32, -bound, bound)
    bv = jax.random.uniform(kbv, (VALUE_DIM,), jnp.float32, -bound, bound)
    return {"hidden": hidden, "Wp": Wp, "bp": bp, "Wv": Wv, "bv": bv}


def prep_params(raw, weight_dtype=jnp.bfloat16, out_dtype=jnp.bfloat16):
    """Fold eval-mode BN into the next Linear, fuse heads, pad to 128 lanes, cast."""
    # 1) BN folding:  BN(leaky(z)) = leaky(z)*s + t  folds into the next Linear:
    #    (a*s + t) @ W + b == a @ (s[:,None]*W) + (t @ W + b)
    folded = []
    s_prev = t_prev = None
    for (W, b, gamma, beta, mean, var) in raw["hidden"]:
        if s_prev is not None:
            b = b + t_prev @ W
            W = s_prev[:, None] * W
        folded.append((W, b))
        s = gamma / jnp.sqrt(var + BN_EPS)
        t = beta - mean * s
        s_prev, t_prev = s, t
    Wp, bp, Wv, bv = raw["Wp"], raw["bp"], raw["Wv"], raw["bv"]
    if s_prev is not None:
        bp = bp + t_prev @ Wp
        Wp = s_prev[:, None] * Wp
        bv = bv + t_prev @ Wv
        Wv = s_prev[:, None] * Wv

    # 2) fuse both heads into one lane-dense matmul.
    Wh = jnp.concatenate([Wp, Wv], axis=1)
    bh = jnp.concatenate([bp, bv], axis=0)

    # 3) zero-pad hidden / head widths to multiples of 128 lanes.
    layers = []
    prev_pad = raw["Wp"].shape[0] if not folded else folded[0][0].shape[0]
    for (W, b) in folded:
        out = W.shape[1]
        out_pad = _round_up(out, LANE)
        Wz = jnp.zeros((prev_pad, out_pad), jnp.float32).at[:W.shape[0], :out].set(W)
        bz = jnp.zeros((1, out_pad), jnp.float32).at[0, :out].set(b)
        layers.append((Wz.astype(weight_dtype), bz))
        prev_pad = out_pad
    h_out = Wh.shape[1]
    h_pad = _round_up(h_out, LANE)
    Whz = jnp.zeros((prev_pad, h_pad), jnp.float32).at[:Wh.shape[0], :h_out].set(Wh)
    bhz = jnp.zeros((1, h_pad), jnp.float32).at[0, :h_out].set(bh)

    return {
        "layers": layers,
        "head": (Whz.astype(weight_dtype), bhz),
        "weight_dtype": weight_dtype,
        "out_dtype": out_dtype,
        "policy_dim": raw["Wp"].shape[1],
        "value_dim": raw["Wv"].shape[1],
        "head_pad": h_pad,
    }


# --------------------------------------------------------------------------
# Forward wrappers
# --------------------------------------------------------------------------
def _pick_batch_tile(B):
    """Grid path tile: multiple of 256 rows, <= MAX_BATCH_TILE, and always
    >= 2 grid steps so the 'parallel' axis can shard across both v7x TCs."""
    half = _round_up((B + 1) // 2, 256)
    return max(256, min(MAX_BATCH_TILE, half))


def torch_all_layers_forward_fused(features, cards, params, *,
                                   gridless_max_batch=GRIDLESS_MAX_BATCH):
    """Hot path: returns the fused, 128-lane-padded (B, head_pad) output buffer
    (policy logits in [:, :policy_dim], value in [:, policy_dim:policy_dim+2]).
    `cards` is accepted but unused (matches the PyTorch forward)."""
    del cards
    layers = params["layers"]
    wh, bh = params["head"]
    head_pad = params["head_pad"]
    out_dtype = params["out_dtype"]
    n_hidden = len(layers)

    flat = []
    for (w, b) in layers:
        flat += [w, b]
    flat += [wh, bh]

    B, F = features.shape
    kernel = _make_kernel(n_hidden, params["weight_dtype"])

    if B <= gridless_max_batch:
        # Single shot: everything VMEM-resident, no pipeline step overhead.
        return pl.pallas_call(
            kernel,
            out_shape=jax.ShapeDtypeStruct((B, head_pad), out_dtype),
            in_specs=[pl.BlockSpec(memory_space=pltpu.MemorySpace.VMEM)]
            * (1 + len(flat)),
            out_specs=pl.BlockSpec(memory_space=pltpu.MemorySpace.VMEM),
            compiler_params=pltpu.CompilerParams(
                vmem_limit_bytes=VMEM_LIMIT_BYTES),
        )(features, *flat)

    # Large batch: row tiles of 256..2048 (>= 2 steps), "parallel" for v7x
    # megacore; tiny weights stay full-array with constant index_maps.
    tile = _pick_batch_tile(B)
    Bp = _round_up(B, tile)
    if Bp != B:
        features = jnp.pad(features, ((0, Bp - B), (0, 0)))
    in_specs = [pl.BlockSpec((tile, F), lambda i: (i, 0))]
    for arr in flat:
        in_specs.append(pl.BlockSpec(arr.shape, lambda i: (0, 0)))
    out = pl.pallas_call(
        kernel,
        out_shape=jax.ShapeDtypeStruct((Bp, head_pad), out_dtype),
        grid=(Bp // tile,),
        in_specs=in_specs,
        out_specs=pl.BlockSpec((tile, head_pad), lambda i: (i, 0)),
        compiler_params=pltpu.CompilerParams(
            dimension_semantics=("parallel",),
            vmem_limit_bytes=VMEM_LIMIT_BYTES),
    )(features, *flat)
    return out[:B] if Bp != B else out


def split_heads(fused_out, params):
    """Lazy view-style split; prefer doing this at the consumer, not eagerly."""
    pdim, vdim = params["policy_dim"], params["value_dim"]
    return fused_out[:, :pdim], fused_out[:, pdim:pdim + vdim]


def torch_all_layers_forward(features, cards, params, **kw):
    """Drop-in (policy, value) API matching the PyTorch module."""
    fused = torch_all_layers_forward_fused(features, cards, params, **kw)
    return split_heads(fused, params)


# --------------------------------------------------------------------------
# Pure-JAX reference (eval-mode, un-folded, f32)
# --------------------------------------------------------------------------
def reference_forward(features, raw):
    x = features
    for (W, b, gamma, beta, mean, var) in raw["hidden"]:
        z = x @ W + b
        a = _leaky_relu(z)
        x = (a - mean) / jnp.sqrt(var + BN_EPS) * gamma + beta   # BN eval; Dropout = id
    policy = x @ raw["Wp"] + raw["bp"]
    value = x @ raw["Wv"] + raw["bv"]
    return policy, value


if __name__ == "__main__":
    GAME_FEATURES = 32
    CARDS_FEATURES = 16
    HIDDEN = [64, 64]

    key = jax.random.PRNGKey(0)
    kf, kc, kp = jax.random.split(key, 3)
    raw = init_raw_params(kp, GAME_FEATURES, HIDDEN)
    params = prep_params(raw)

    # --- small batch: gridless (single-shot) path -------------------------
    B_small = 8
    feats_s = jax.random.normal(kf, (B_small, GAME_FEATURES), jnp.float32)
    cards_s = jax.random.normal(kc, (B_small, CARDS_FEATURES), jnp.float32)  # unused
    fused_s = torch_all_layers_forward_fused(feats_s, cards_s, params)
    jax.block_until_ready(fused_s)
    pol_s, val_s = split_heads(fused_s, params)

    ref_p, ref_v = reference_forward(feats_s, raw)
    assert pol_s.shape == (B_small, POLICY_DIM) and val_s.shape == (B_small, VALUE_DIM)
    # bf16 weights + bf16 output vs f32 reference -> loose-ish tolerance
    assert jnp.allclose(pol_s.astype(jnp.float32), ref_p, atol=5e-2, rtol=5e-2)
    assert jnp.allclose(val_s.astype(jnp.float32), ref_v, atol=5e-2, rtol=5e-2)

    # --- grid path exercised with a lowered threshold (2 parallel steps) ---
    B_big = 512
    feats_b = jax.random.normal(jax.random.PRNGKey(1),
                                (B_big, GAME_FEATURES), jnp.float32)
    pol_b, val_b = torch_all_layers_forward(feats_b, None, params,
                                            gridless_max_batch=64)
    jax.block_until_ready((pol_b, val_b))

    ref_pb, ref_vb = reference_forward(feats_b, raw)
    assert pol_b.shape == (B_big, POLICY_DIM) and val_b.shape == (B_big, VALUE_DIM)
    assert jnp.allclose(pol_b.astype(jnp.float32), ref_pb, atol=5e-2, rtol=5e-2)
    assert jnp.allclose(val_b.astype(jnp.float32), ref_vb, atol=5e-2, rtol=5e-2)

    print("KERNEL_OK")
</pallas_src>

<mosaic_0001>
module attributes {stable_mosaic.version = 11 : i64} {
  func.func @kernel(%arg0: memref<8x32xf32, #tpu.memory_space<vmem>>, %arg1: memref<32x128xbf16, #tpu.memory_space<vmem>>, %arg2: memref<1x128xf32, #tpu.memory_space<vmem>>, %arg3: memref<128x128xbf16, #tpu.memory_space<vmem>>, %arg4: memref<1x128xf32, #tpu.memory_space<vmem>>, %arg5: memref<128x256xbf16, #tpu.memory_space<vmem>>, %arg6: memref<1x256xf32, #tpu.memory_space<vmem>>, %arg7: memref<8x256xbf16, #tpu.memory_space<vmem>>) attributes {dimension_semantics = [], scalar_prefetch = 0 : i64, scratch_operands = 0 : i64, tpu.core_type = #tpu.core_type<tc>} {
    %c0 = arith.constant 0 : index
    %c0_0 = arith.constant 0 : index
    %0 = vector.load %arg0[%c0, %c0_0] : memref<8x32xf32, #tpu.memory_space<vmem>>, vector<8x32xf32>
    %1 = arith.truncf %0 : vector<8x32xf32> to vector<8x32xbf16>
    %c0_1 = arith.constant 0 : index
    %c0_2 = arith.constant 0 : index
    %2 = vector.load %arg1[%c0_1, %c0_2] : memref<32x128xbf16, #tpu.memory_space<vmem>>, vector<32x128xbf16>
    %cst = arith.constant dense<0.000000e+00> : vector<8x128xf32>
    %3 = tpu.matmul %1, %2, %cst {dimension_numbers = #tpu.dot_dimension_numbers<[1], [0], [0], [1], [0, 0, 1, 1], [], []>} : vector<8x32xbf16>, vector<32x128xbf16>, vector<8x128xf32> -> vector<8x128xf32>
    %c0_3 = arith.constant 0 : index
    %c0_4 = arith.constant 0 : index
    %4 = vector.load %arg2[%c0_3, %c0_4] : memref<1x128xf32, #tpu.memory_space<vmem>>, vector<1x128xf32>
    %5 = vector.broadcast %4 : vector<1x128xf32> to vector<8x128xf32>
    %6 = arith.addf %3, %5 : vector<8x128xf32>
    %cst_5 = arith.constant 0.000000e+00 : f32
    %7 = vector.broadcast %cst_5 : f32 to vector<8x128xf32>
    %8 = arith.cmpf ogt, %6, %7 : vector<8x128xf32>
    %cst_6 = arith.constant 0.00999999977 : f32
    %9 = vector.broadcast %cst_6 : f32 to vector<8x128xf32>
    %10 = arith.mulf %9, %6 : vector<8x128xf32>
    %11 = arith.select %8, %6, %10 : vector<8x128xi1>, vector<8x128xf32>
    %12 = arith.truncf %11 : vector<8x128xf32> to vector<8x128xbf16>
    %c0_7 = arith.constant 0 : index
    %c0_8 = arith.constant 0 : index
    %13 = vector.load %arg3[%c0_7, %c0_8] : memref<128x128xbf16, #tpu.memory_space<vmem>>, vector<128x128xbf16>
    %cst_9 = arith.constant dense<0.000000e+00> : vector<8x128xf32>
    %14 = tpu.matmul %12, %13, %cst_9 {dimension_numbers = #tpu.dot_dimension_numbers<[1], [0], [0], [1], [0, 0, 1, 1], [], []>} : vector<8x128xbf16>, vector<128x128xbf16>, vector<8x128xf32> -> vector<8x128xf32>
    %c0_10 = arith.constant 0 : index
    %c0_11 = arith.constant 0 : index
    %15 = vector.load %arg4[%c0_10, %c0_11] : memref<1x128xf32, #tpu.memory_space<vmem>>, vector<1x128xf32>
    %16 = vector.broadcast %15 : vector<1x128xf32> to vector<8x128xf32>
    %17 = arith.addf %14, %16 : vector<8x128xf32>
    %cst_12 = arith.constant 0.000000e+00 : f32
    %18 = vector.broadcast %cst_12 : f32 to vector<8x128xf32>
    %19 = arith.cmpf ogt, %17, %18 : vector<8x128xf32>
    %cst_13 = arith.constant 0.00999999977 : f32
    %20 = vector.broadcast %cst_13 : f32 to vector<8x128xf32>
    %21 = arith.mulf %20, %17 : vector<8x128xf32>
    %22 = arith.select %19, %17, %21 : vector<8x128xi1>, vector<8x128xf32>
    %23 = arith.truncf %22 : vector<8x128xf32> to vector<8x128xbf16>
    %c0_14 = arith.constant 0 : index
    %c0_15 = arith.constant 0 : index
    %24 = vector.load %arg5[%c0_14, %c0_15] : memref<128x256xbf16, #tpu.memory_space<vmem>>, vector<128x256xbf16>
    %cst_16 = arith.constant dense<0.000000e+00> : vector<8x256xf32>
    %25 = tpu.matmul %23, %24, %cst_16 {dimension_numbers = #tpu.dot_dimension_numbers<[1], [0], [0], [1], [0, 0, 1, 1], [], []>} : vector<8x128xbf16>, vector<128x256xbf16>, vector<8x256xf32> -> vector<8x256xf32>
    %c0_17 = arith.constant 0 : index
    %c0_18 = arith.constant 0 : index
    %26 = vector.load %arg6[%c0_17, %c0_18] : memref<1x256xf32, #tpu.memory_space<vmem>>, vector<1x256xf32>
    %27 = vector.broadcast %26 : vector<1x256xf32> to vector<8x256xf32>
    %28 = arith.addf %25, %27 : vector<8x256xf32>
    %29 = arith.truncf %28 : vector<8x256xf32> to vector<8x256xbf16>
    %c0_19 = arith.constant 0 : index
    %c0_20 = arith.constant 0 : index
    %30 = vector.load %arg7[%c0_19, %c0_20] : memref<8x256xbf16, #tpu.memory_space<vmem>>, vector<8x256xbf16>
    tpu.vector_store %arg7[%c0_19, %c0_20], %29 {strides = array<i32>} : memref<8x256xbf16, #tpu.memory_space<vmem>>, vector<8x256xbf16>,
    return
  }
}

</mosaic_0001>

<llo_original>
// kernel: tpu_custom_call.1
$region0: #{tpu_custom_call.1}
  #allocation0 [shape = 'u32[]', space=smem, size = 0x4, offset = 0x4, fixed_abs, tag = 'smem constant byte address 0x4 - core index']
  #allocation1 [shape = 'u32[144,128]{1,0:T(1,128)}', space=vmem, size = 0x12000, scoped, tag = 'internal scratch']
  %s0 = inlined_call_operand.hbm [shape: f32[8,32], index: 0, kind: input, shape index: {}]
  %s1 = inlined_call_operand.hbm [shape: bf16[32,128], index: 1, kind: input, shape index: {}]
  %s2 = inlined_call_operand.vmem [shape: f32[1,128], index: 2, kind: input, shape index: {}]
  %s3 = inlined_call_operand.hbm [shape: bf16[128,128], index: 3, kind: input, shape index: {}]
  %s4 = inlined_call_operand.vmem [shape: f32[1,128], index: 4, kind: input, shape index: {}]
  %s5 = inlined_call_operand.hbm [shape: bf16[128,256], index: 5, kind: input, shape index: {}]
  %s6 = inlined_call_operand.vmem [shape: f32[1,256], index: 6, kind: input, shape index: {}]
  %s7 = inlined_call_operand.hbm [shape: bf16[8,256], index: 7, kind: output, shape index: {}]
  %s8 = sld [smem:[#allocation0]]
  $region54: #{tpu_custom_call.1} parent=0
    _
  %s10 = ssub.s32 1, %s8
  %s11 = scalar_select 0, %s10, %s8
  $region1: #{tpu_custom_call.1} parent=0
    #allocation2 [shape = 'u8[4096]{0}', space=vmem, size = 0x1000, scoped, tag = 'input window, operand 0, single buffered']
    #allocation3 [shape = 's32[1]{0}', space=sflag, size = 0x4, scoped, tag = 'scoped memory for tpu_custom_call.1']
    #allocation4 [shape = 's32[1]{0}', space=sflag, size = 0x4, scoped, tag = 'scoped memory for tpu_custom_call.1']
    #allocation5 [shape = 'u8[8192]{0}', space=vmem, size = 0x2000, scoped, tag = 'input window, operand 1, single buffered']
    #allocation6 [shape = 's32[1]{0}', space=sflag, size = 0x4, scoped, tag = 'scoped memory for tpu_custom_call.1']
    #allocation7 [shape = 'u8[32768]{0}', space=vmem, size = 0x8000, scoped, tag = 'input window, operand 3, single buffered']
    #allocation8 [shape = 'u8[65536]{0}', space=vmem, size = 0x10000, scoped, tag = 'input window, operand 5, single buffered']
    #allocation9 [shape = 's32[1]{0}', space=sflag, size = 0x4, scoped, tag = 'scoped memory for tpu_custom_call.1']
    #allocation10 [shape = 'u8[4096]{0}', space=vmem, size = 0x1000, scoped, tag = 'output window, operand 0, single buffered']
    %12 = vsyncpa [#allocation3], 0
    %13 = vsyncpa [#allocation6], 0
    %14 = vsyncpa [#allocation9], 0
    %15 = vsyncpa [#allocation4], 0
    // Predicated region
    $region2: #{tpu_custom_call.1} parent=1 // pred_check
      _
    $region3: #{tpu_custom_call.1} parent=1 // pred_check_branch
      %17 = sbr.rel (0) target = $region5
    $region4: #{tpu_custom_call.1} parent=1 // pred_region
      %s19 = ssub.s32 128, 128
      %20 = vsyncadd [#allocation3], %s19
      %s22 = sshll.u32 [#allocation2], 4
      %s23 = int_to_ptr.vmem [resolvable:$true] %s22
      %25 = dma.hbm_to_vmem [thread:$0]  %s0, 128, %s23, [#allocation3]
    $region5: #{tpu_custom_call.1} parent=1 // pred_fallthru
      _
    // Predicated region
    $region6: #{tpu_custom_call.1} parent=1 // pred_check
      _
    $region7: #{tpu_custom_call.1} parent=1 // pred_check_branch
      %27 = sbr.rel (0) target = $region9
    $region8: #{tpu_custom_call.1} parent=1 // pred_region
      %s29 = ssub.s32 256, 256
      %30 = vsyncadd [#allocation6], %s29
      %s31 = sshll.u32 [#allocation5], 4
      %s32 = int_to_ptr.vmem [resolvable:$true] %s31
      %37 = dma.hbm_to_vmem [thread:$0]  %s1, 256, %s32, [#allocation6], 64, 64, 4
    $region9: #{tpu_custom_call.1} parent=1 // pred_fallthru
      _
    // Predicated region
    $region10: #{tpu_custom_call.1} parent=1 // pred_check
      _
    $region11: #{tpu_custom_call.1} parent=1 // pred_check_branch
      %39 = sbr.rel (0) target = $region13
    $region12: #{tpu_custom_call.1} parent=1 // pred_region
      _
    $region13: #{tpu_custom_call.1} parent=1 // pred_fallthru
      _
    // Predicated region
    $region14: #{tpu_custom_call.1} parent=1 // pred_check
      _
    $region15: #{tpu_custom_call.1} parent=1 // pred_check_branch
      %41 = sbr.rel (0) target = $region17
    $region16: #{tpu_custom_call.1} parent=1 // pred_region
      %s43 = ssub.s32 1024, 1024
      %44 = vsyncadd [#allocation6], %s43
      %s45 = sshll.u32 [#allocation7], 4
      %s46 = int_to_ptr.vmem [resolvable:$true] %s45
      %51 = dma.hbm_to_vmem [thread:$0]  %s3, 1024, %s46, [#allocation6], 64, 64, 4
    $region17: #{tpu_custom_call.1} parent=1 // pred_fallthru
      _
    // Predicated region
    $region18: #{tpu_custom_call.1} parent=1 // pred_check
      _
    $region19: #{tpu_custom_call.1} parent=1 // pred_check_branch
      %53 = sbr.rel (0) target = $region21
    $region20: #{tpu_custom_call.1} parent=1 // pred_region
      _
    $region21: #{tpu_custom_call.1} parent=1 // pred_fallthru
      _
    // Predicated region
    $region22: #{tpu_custom_call.1} parent=1 // pred_check
      _
    $region23: #{tpu_custom_call.1} parent=1 // pred_check_branch
      %55 = sbr.rel (0) target = $region25
    $region24: #{tpu_custom_call.1} parent=1 // pred_region
      %s57 = ssub.s32 2048, 2048
      %58 = vsyncadd [#allocation9], %s57
      %s59 = sshll.u32 [#allocation8], 4
      %s60 = int_to_ptr.vmem [resolvable:$true] %s59
      %65 = dma.hbm_to_vmem [thread:$0]  %s5, 2048, %s60, [#allocation9], 128, 128, 8
    $region25: #{tpu_custom_call.1} parent=1 // pred_fallthru
      _
    // Predicated region
    $region26: #{tpu_custom_call.1} parent=1 // pred_check
      _
    $region27: #{tpu_custom_call.1} parent=1 // pred_check_branch
      %67 = sbr.rel (0) target = $region29
    $region28: #{tpu_custom_call.1} parent=1 // pred_region
      _
    $region29: #{tpu_custom_call.1} parent=1 // pred_fallthru
      _
    // Predicated region
    $region30: #{tpu_custom_call.1} parent=1 // pred_check
      _
    $region31: #{tpu_custom_call.1} parent=1 // pred_check_branch
      %69 = sbr.rel (0) target = $region33
    $region32: #{tpu_custom_call.1} parent=1 // pred_region
      %70 = dma.done [#allocation3], 128
    $region33: #{tpu_custom_call.1} parent=1 // pred_fallthru
      _
    // Predicated region
    $region34: #{tpu_custom_call.1} parent=1 // pred_check
      _
    $region35: #{tpu_custom_call.1} parent=1 // pred_check_branch
      %72 = sbr.rel (0) target = $region37
    $region36: #{tpu_custom_call.1} parent=1 // pred_region
      %73 = dma.done [#allocation6], 256
    $region37: #{tpu_custom_call.1} parent=1 // pred_fallthru
      _
    // Predicated region
    $region38: #{tpu_custom_call.1} parent=1 // pred_check
      _
    $region39: #{tpu_custom_call.1} parent=1 // pred_check_branch
      %75 = sbr.rel (0) target = $region41
    $region40: #{tpu_custom_call.1} parent=1 // pred_region
      %76 = dma.done [#allocation6], 1024
    $region41: #{tpu_custom_call.1} parent=1 // pred_fallthru
      _
    // Predicated region
    $region42: #{tpu_custom_call.1} parent=1 // pred_check
      _
    $region43: #{tpu_custom_call.1} parent=1 // pred_check_branch
      %78 = sbr.rel (0) target = $region45
    $region44: #{tpu_custom_call.1} parent=1 // pred_region
      %79 = dma.done [#allocation9], 2048
    $region45: #{tpu_custom_call.1} parent=1 // pred_fallthru
      _
    %v81 = vld [vmem:[#allocation2] sm:$0xff]
    %v82 = vpack.c.bf16 %v81, %v81
    %v83 = vld [vmem:[#allocation5] sm:$0xf]
    %v84 = vld [vmem:[#allocation5 + $0x4] sm:$0xf]
    %v85 = vld [vmem:[#allocation5 + $0x8] sm:$0xf]
    %v86 = vld [vmem:[#allocation5 + $0xc] sm:$0xf]
    %v87 = vld [vmem:[%s2] sm:$0x1]
    %v89 = vlaneseq
    %v90 = vshrl.u32 %v89, 7
    %v91 = vsub.s32 0, %v90
    %v92 = vrot.slane %v87, %v91
    %v98 = vunpack.c.l.b16 %v83
    %v99 = vunpack.c.l.b16 %v84
    %v100 = vunpack.c.l.b16 %v85
    %v101 = vunpack.c.l.b16 %v86
    %v102 = vpack.c.b16 %v99, %v98
    %v103 = vpack.c.b16 %v101, %v100
    %vm106 = vcmask 261120
    %v108 = vsel %vm106, %v82, 0
    %110 = vmatprep.subr.bf16.mxu0 0
    %111 = vmatpush1.bf16.msra.mxu0 0
    %112 = vmatprep.subr.bf16.mxu0 0
    %113 = vmatpush1.bf16.msra.mxu0 0
    %114 = vmatprep.subr.bf16.mxu0 0
    %115 = vmatpush1.bf16.msra.mxu0 0
    %116 = vmatprep.subr.bf16.mxu0 0
    %117 = vmatpush1.bf16.msra.mxu0 0
    %118 = vmatprep.subr.bf16.mxu0 0
    %119 = vmatpush1.bf16.msra.mxu0 0
    %120 = vmatprep.subr.bf16.mxu0 0
    %121 = vmatpush1.bf16.msra.mxu0 0
    %122 = vmatprep.subr.bf16.mxu0 0
    %123 = vmatpush1.bf16.msra.mxu0 %v103
    %124 = vmatprep.subr.bf16.mxu0 0
    %125 = vmatpush1.bf16.msra.mxu0 %v102
    %126 = vmatprep.subr.bf16.mxu0 0
    %127 = vmatpush2.bf16.msra.mxu0 0
    %128 = vmatprep.subr.bf16.mxu0 0
    %129 = vmatpush2.bf16.msra.mxu0 0
    %130 = vmatprep.subr.bf16.mxu0 0
    %131 = vmatpush2.bf16.msra.mxu0 0
    %132 = vmatprep.subr.bf16.mxu0 0
    %133 = vmatpush2.bf16.msra.mxu0 0
    %134 = vmatprep.subr.bf16.mxu0 0
    %135 = vmatpush2.bf16.msra.mxu0 0
    %136 = vmatprep.subr.bf16.mxu0 0
    %137 = vmatpush2.bf16.msra.mxu0 0
    %138 = vmatprep.subr.bf16.mxu0 0
    %139 = vmatpush2.bf16.msra.mxu0 0
    %140 = vmatprep.subr.bf16.mxu0 0
    %141 = vmatpush2.bf16.msra.mxu0 0
    %142 = vmatprep.mubr.bf16.mxu0 0
    %143 = vmatmul.mubr.bf16.gmra.mxu0 %v108
    %v144 = vpop.f32.mrf.mxu0
    %v145 = vadd.f32 %v92, %v144
    %v146 = vpop.f32.mrf.mxu0
    %v147 = vpop.f32.mrf.mxu0
    %v148 = vpop.f32.mrf.mxu0
    %149 = vdwg.mxu0
    %vm150 = vcmp.gt.f32.partialorder %v145, 0.0
    %v151 = vmul.f32 %v145, 0.01
    %v152 = vsel %vm150, %v145, %v151
    %v153 = vpack.c.bf16 %v152, %v152
    %v154 = vld [vmem:[#allocation7] sm:$0xf]
    %v155 = vld [vmem:[#allocation7 + $0x4] sm:$0xf]
    %v156 = vld [vmem:[#allocation7 + $0x8] sm:$0xf]
    %v157 = vld [vmem:[#allocation7 + $0xc] sm:$0xf]
    %v158 = vld [vmem:[#allocation7 + $0x10] sm:$0xf]
    %v159 = vld [vmem:[#allocation7 + $0x14] sm:$0xf]
    %v160 = vld [vmem:[#allocation7 + $0x18] sm:$0xf]
    %v161 = vld [vmem:[#allocation7 + $0x1c] sm:$0xf]
    %v162 = vld [vmem:[#allocation7 + $0x20] sm:$0xf]
    %v163 = vld [vmem:[#allocation7 + $0x24] sm:$0xf]
    %v164 = vld [vmem:[#allocation7 + $0x28] sm:$0xf]
    %v165 = vld [vmem:[#allocation7 + $0x2c] sm:$0xf]
    %v166 = vld [vmem:[#allocation7 + $0x30] sm:$0xf]
    %v167 = vld [vmem:[#allocation7 + $0x34] sm:$0xf]
    %v168 = vld [vmem:[#allocation7 + $0x38] sm:$0xf]
    %v169 = vld [vmem:[#allocation7 + $0x3c] sm:$0xf]
    %v170 = vld [vmem:[%s4] sm:$0x1]
    %v172 = vlaneseq
    %v173 = vshrl.u32 %v172, 7
    %v174 = vsub.s32 0, %v173
    %v175 = vrot.slane %v170, %v174
    %v193 = vunpack.c.l.b16 %v154
    %v194 = vunpack.c.l.b16 %v155
    %v195 = vunpack.c.l.b16 %v156
    %v196 = vunpack.c.l.b16 %v157
    %v197 = vunpack.c.l.b16 %v158
    %v198 = vunpack.c.l.b16 %v159
    %v199 = vunpack.c.l.b16 %v160
    %v200 = vunpack.c.l.b16 %v161
    %v201 = vunpack.c.l.b16 %v162
    %v202 = vunpack.c.l.b16 %v163
    %v203 = vunpack.c.l.b16 %v164
    %v204 = vunpack.c.l.b16 %v165
    %v205 = vunpack.c.l.b16 %v166
    %v206 = vunpack.c.l.b16 %v167
    %v207 = vunpack.c.l.b16 %v168
    %v208 = vunpack.c.l.b16 %v169
    %v209 = vpack.c.b16 %v194, %v193
    %v210 = vpack.c.b16 %v196, %v195
    %v211 = vpack.c.b16 %v198, %v197
    %v212 = vpack.c.b16 %v200, %v199
    %v213 = vpack.c.b16 %v202, %v201
    %v214 = vpack.c.b16 %v204, %v203
    %v215 = vpack.c.b16 %v206, %v205
    %v216 = vpack.c.b16 %v208, %v207
    %225 = vmatprep.subr.bf16.mxu0 0
    %226 = vmatpush1.bf16.msra.mxu0 %v216
    %227 = vmatprep.subr.bf16.mxu0 0
    %228 = vmatpush1.bf16.msra.mxu0 %v215
    %229 = vmatprep.subr.bf16.mxu0 0
    %230 = vmatpush1.bf16.msra.mxu0 %v214
    %231 = vmatprep.subr.bf16.mxu0 0
    %232 = vmatpush1.bf16.msra.mxu0 %v213
    %233 = vmatprep.subr.bf16.mxu0 0
    %234 = vmatpush1.bf16.msra.mxu0 %v212
    %235 = vmatprep.subr.bf16.mxu0 0
    %236 = vmatpush1.bf16.msra.mxu0 %v211
    %237 = vmatprep.subr.bf16.mxu0 0
    %238 = vmatpush1.bf16.msra.mxu0 %v210
    %239 = vmatprep.subr.bf16.mxu0 0
    %240 = vmatpush1.bf16.msra.mxu0 %v209
    %241 = vmatprep.subr.bf16.mxu0 0
    %242 = vmatpush2.bf16.msra.mxu0 0
    %243 = vmatprep.subr.bf16.mxu0 0
    %244 = vmatpush2.bf16.msra.mxu0 0
    %245 = vmatprep.subr.bf16.mxu0 0
    %246 = vmatpush2.bf16.msra.mxu0 0
    %247 = vmatprep.subr.bf16.mxu0 0
    %248 = vmatpush2.bf16.msra.mxu0 0
    %249 = vmatprep.subr.bf16.mxu0 0
    %250 = vmatpush2.bf16.msra.mxu0 0
    %251 = vmatprep.subr.bf16.mxu0 0
    %252 = vmatpush2.bf16.msra.mxu0 0
    %253 = vmatprep.subr.bf16.mxu0 0
    %254 = vmatpush2.bf16.msra.mxu0 0
    %255 = vmatprep.subr.bf16.mxu0 0
    %256 = vmatpush2.bf16.msra.mxu0 0
    %257 = vmatprep.mubr.bf16.mxu0 0
    %258 = vmatmul.mubr.bf16.gmra.mxu0 %v153
    %v259 = vpop.f32.mrf.mxu0
    %v260 = vadd.f32 %v175, %v259
    %v261 = vpop.f32.mrf.mxu0
    %v262 = vpop.f32.mrf.mxu0
    %v263 = vpop.f32.mrf.mxu0
    %264 = vdwg.mxu0
    %vm265 = vcmp.gt.f32.partialorder %v260, 0.0
    %v266 = vmul.f32 %v260, 0.01
    %v267 = vsel %vm265, %v260, %v266
    %v268 = vpack.c.bf16 %v267, %v267
    %v269 = vld [vmem:[#allocation8] sm:$0xff]
    %v270 = vld [vmem:[#allocation8 + $0x8] sm:$0xff]
    %v271 = vld [vmem:[#allocation8 + $0x10] sm:$0xff]
    %v272 = vld [vmem:[#allocation8 + $0x18] sm:$0xff]
    %v273 = vld [vmem:[#allocation8 + $0x20] sm:$0xff]
    %v274 = vld [vmem:[#allocation8 + $0x28] sm:$0xff]
    %v275 = vld [vmem:[#allocation8 + $0x30] sm:$0xff]
    %v276 = vld [vmem:[#allocation8 + $0x38] sm:$0xff]
    %v277 = vld [vmem:[#allocation8 + $0x40] sm:$0xff]
    %v278 = vld [vmem:[#allocation8 + $0x48] sm:$0xff]
    %v279 = vld [vmem:[#allocation8 + $0x50] sm:$0xff]
    %v280 = vld [vmem:[#allocation8 + $0x58] sm:$0xff]
    %v281 = vld [vmem:[#allocation8 + $0x60] sm:$0xff]
    %v282 = vld [vmem:[#allocation8 + $0x68] sm:$0xff]
    %v283 = vld [vmem:[#allocation8 + $0x70] sm:$0xff]
    %v284 = vld [vmem:[#allocation8 + $0x78] sm:$0xff]
    %v285 = vld [vmem:[%s6] sm:$0x3]
    %v287 = vlaneseq
    %v288 = vshrl.u32 %v287, 7
    %v289 = vsub.s32 0, %v288
    %v290 = vrot.slane %v285, %v289
    %v291 = vlaneseq
    %v292 = vshrl.u32 %v291, 7
    %v293 = vsub.s32 1, %v292
    %v294 = vrot.slane %v285, %v293
    %v313 = vunpack.c.l.b16 %v269
    %v314 = vunpack.c.h.b16 %v269
    %v315 = vunpack.c.l.b16 %v270
    %v316 = vunpack.c.h.b16 %v270
    %v317 = vunpack.c.l.b16 %v271
    %v318 = vunpack.c.h.b16 %v271
    %v319 = vunpack.c.l.b16 %v272
    %v320 = vunpack.c.h.b16 %v272
    %v321 = vunpack.c.l.b16 %v273
    %v322 = vunpack.c.h.b16 %v273
    %v323 = vunpack.c.l.b16 %v274
    %v324 = vunpack.c.h.b16 %v274
    %v325 = vunpack.c.l.b16 %v275
    %v326 = vunpack.c.h.b16 %v275
    %v327 = vunpack.c.l.b16 %v276
    %v328 = vunpack.c.h.b16 %v276
    %v329 = vunpack.c.l.b16 %v277
    %v330 = vunpack.c.h.b16 %v277
    %v331 = vunpack.c.l.b16 %v278
    %v332 = vunpack.c.h.b16 %v278
    %v333 = vunpack.c.l.b16 %v279
    %v334 = vunpack.c.h.b16 %v279
    %v335 = vunpack.c.l.b16 %v280
    %v336 = vunpack.c.h.b16 %v280
    %v337 = vunpack.c.l.b16 %v281
    %v338 = vunpack.c.h.b16 %v281
    %v339 = vunpack.c.l.b16 %v282
    %v340 = vunpack.c.h.b16 %v282
    %v341 = vunpack.c.l.b16 %v283
    %v342 = vunpack.c.h.b16 %v283
    %v343 = vunpack.c.l.b16 %v284
    %v344 = vunpack.c.h.b16 %v284
    %v345 = vpack.c.b16 %v315, %v313
    %v346 = vpack.c.b16 %v316, %v314
    %v347 = vpack.c.b16 %v319, %v317
    %v348 = vpack.c.b16 %v320, %v318
    %v349 = vpack.c.b16 %v323, %v321
    %v350 = vpack.c.b16 %v324, %v322
    %v351 = vpack.c.b16 %v327, %v325
    %v352 = vpack.c.b16 %v328, %v326
    %v353 = vpack.c.b16 %v331, %v329
    %v354 = vpack.c.b16 %v332, %v330
    %v355 = vpack.c.b16 %v335, %v333
    %v356 = vpack.c.b16 %v336, %v334
    %v357 = vpack.c.b16 %v339, %v337
    %v358 = vpack.c.b16 %v340, %v338
    %v359 = vpack.c.b16 %v343, %v341
    %v360 = vpack.c.b16 %v344, %v342
    %377 = vmatprep.subr.bf16.mxu0 %v360
    %378 = vmatpush1.bf16.msra.mxu0 %v359
    %379 = vmatprep.subr.bf16.mxu0 %v358
    %380 = vmatpush1.bf16.msra.mxu0 %v357
    %381 = vmatprep.subr.bf16.mxu0 %v356
    %382 = vmatpush1.bf16.msra.mxu0 %v355
    %383 = vmatprep.subr.bf16.mxu0 %v354
    %384 = vmatpush1.bf16.msra.mxu0 %v353
    %385 = vmatprep.subr.bf16.mxu0 %v352
    %386 = vmatpush1.bf16.msra.mxu0 %v351
    %387 = vmatprep.subr.bf16.mxu0 %v350
    %388 = vmatpush1.bf16.msra.mxu0 %v349
    %389 = vmatprep.subr.bf16.mxu0 %v348
    %390 = vmatpush1.bf16.msra.mxu0 %v347
    %391 = vmatprep.subr.bf16.mxu0 %v346
    %392 = vmatpush1.bf16.msra.mxu0 %v345
    %393 = vmatprep.subr.bf16.mxu0 0
    %394 = vmatpush2.bf16.msra.mxu0 0
    %395 = vmatprep.subr.bf16.mxu0 0
    %396 = vmatpush2.bf16.msra.mxu0 0
    %397 = vmatprep.subr.bf16.mxu0 0
    %398 = vmatpush2.bf16.msra.mxu0 0
    %399 = vmatprep.subr.bf16.mxu0 0
    %400 = vmatpush2.bf16.msra.mxu0 0
    %401 = vmatprep.subr.bf16.mxu0 0
    %402 = vmatpush2.bf16.msra.mxu0 0
    %403 = vmatprep.subr.bf16.mxu0 0
    %404 = vmatpush2.bf16.msra.mxu0 0
    %405 = vmatprep.subr.bf16.mxu0 0
    %406 = vmatpush2.bf16.msra.mxu0 0
    %407 = vmatprep.subr.bf16.mxu0 0
    %408 = vmatpush2.bf16.msra.mxu0 0
    %409 = vmatprep.mubr.bf16.mxu0 0
    %410 = vmatmul.mubr.bf16.gmra.mxu0 %v268
    %v411 = vpop.f32.mrf.mxu0
    %v412 = vadd.f32 %v290, %v411
    %v413 = vpop.f32.mrf.mxu0
    %v414 = vadd.f32 %v294, %v413
    %v415 = vpop.f32.mrf.mxu0
    %v416 = vpop.f32.mrf.mxu0
    %417 = vdwg.mxu0
    %v418 = vpack.c.bf16 %v412, %v412
    %v419 = vpack.c.bf16 %v414, %v414
    %v422 = vunpack.c.l.b16 %v418
    %v423 = vunpack.c.l.b16 %v419
    %v424 = vpack.c.b16 %v423, %v422
    %426 = vst [vmem:[#allocation10] sm:$0xff] %v424
    // Predicated region
    $region46: #{tpu_custom_call.1} parent=1 // pred_check
      _
    $region47: #{tpu_custom_call.1} parent=1 // pred_check_branch
      %428 = sbr.rel (0) target = $region49
    $region48: #{tpu_custom_call.1} parent=1 // pred_region
      %s430 = ssub.s32 128, 128
      %431 = vsyncadd [#allocation4], %s430
      %s433 = sshll.u32 [#allocation10], 4
      %s434 = int_to_ptr.vmem [resolvable:$true] %s433
      %436 = dma.vmem_to_hbm [thread:$0]  %s434, 128, %s7, [#allocation4]
    $region49: #{tpu_custom_call.1} parent=1 // pred_fallthru
      _
    // Predicated region
    $region50: #{tpu_custom_call.1} parent=1 // pred_check
      _
    $region51: #{tpu_custom_call.1} parent=1 // pred_check_branch
      %438 = sbr.rel (0) target = $region53
    $region52: #{tpu_custom_call.1} parent=1 // pred_region
      %439 = dma.done [#allocation4], 128
    $region53: #{tpu_custom_call.1} parent=1 // pred_fallthru
      _
    %440 = vsyncpa [#allocation3], 1
    %441 = vsyncpa [#allocation6], 1
    %442 = vsyncpa [#allocation9], 1
    %443 = vsyncpa [#allocation4], 1

</llo_original>
